<compile_context>
chip_gen: v7x
topology: tpu7x:2x2x1
jax: 0.10.0
libtpu: 0.0.40
codegen_flags: <defaults>
</compile_context>

<pallas_src>
import functools

import jax
import jax.numpy as jnp
from jax.experimental import pallas as pl
from jax.experimental.pallas import tpu as pltpu

# Layer sizes from Dir_Net.__init__
SIZES = [350, 150, 50, 15, 5, 1]


def _round_up(x, m):
    return ((x + m - 1) // m) * m


def _cdiv(a, b):
    return -(-a // b)


def _supports_bf16_vregs():
    """True on generations with bf16 VPU/EUP (v6e, v7x); False on v5e/older."""
    try:
        kind = jax.devices()[0].device_kind.lower()
    except Exception:
        return False
    return ("v6" in kind) or ("v7" in kind)


def _dir_net_kernel(x_ref,
                    w1_ref, b1_ref,
                    w2_ref, b2_ref,
                    w3_ref, b3_ref,
                    w4_ref, b4_ref,
                    w5_ref, b5_ref,
                    o_ref,
                    *, act_dtype):
    """Fused 5-layer MLP forward for one batch tile.

    Weights and activations enter the MXU in bf16 with f32 accumulation.
    Bias-add + sigmoid run in `act_dtype` (bf16 on v6e/v7x, f32 on v5e).
    """

    def dense(h_bf16, w_ref, b_ref, out_dtype):
        acc = jnp.dot(h_bf16, w_ref[...], preferred_element_type=jnp.float32)
        return acc.astype(out_dtype) + b_ref[...]

    def sigmoid(h):
        # Single EUP op (tanh); the 0.5*...+0.5 is cheap VALU work.
        return 0.5 * jnp.tanh(0.5 * h) + 0.5

    # In-kernel cast to bf16 (free filler; the MXU wants bf16 inputs anyway).
    h = x_ref[...].astype(jnp.bfloat16)
    h = sigmoid(dense(h, w1_ref, b1_ref, act_dtype)).astype(jnp.bfloat16)
    h = sigmoid(dense(h, w2_ref, b2_ref, act_dtype)).astype(jnp.bfloat16)
    h = sigmoid(dense(h, w3_ref, b3_ref, act_dtype)).astype(jnp.bfloat16)
    h = sigmoid(dense(h, w4_ref, b4_ref, act_dtype)).astype(jnp.bfloat16)
    # Final layer: no activation (matches PyTorch forward); bias-add in f32.
    o_ref[...] = dense(h, w5_ref, b5_ref, jnp.float32).astype(o_ref.dtype)


@functools.partial(jax.jit, static_argnames=("batch_tile", "bf16_activations"))
def dir_net_forward(x, params, *, batch_tile=1024, bf16_activations=None):
    """x: (B, 350) float array.  params: list of 5 (W_(in,out), b_(1,out)) pairs."""
    B, D_in = x.shape
    assert D_in == SIZES[0], f"expected last dim {SIZES[0]}, got {D_in}"

    if bf16_activations is None:
        bf16_activations = _supports_bf16_vregs()
    act_dtype = jnp.bfloat16 if bf16_activations else jnp.float32

    # Tile selection:
    #  - balanced across steps so padded rows stay small (no fixed-1024 pad),
    #  - multiple of 16 (bf16 packs (16,128) sublanes per vreg),
    #  - >= 2 grid steps whenever the batch allows so the "parallel" batch
    #    axis can shard across v7x's 2 TensorCores (one extra ~0.35us step on
    #    single-TC chips is negligible).
    n_steps = max(1, _cdiv(B, int(batch_tile)))
    if B >= 32:
        n_steps = max(n_steps, 2)
    tile = _round_up(_cdiv(B, n_steps), 16)
    B_pad = n_steps * tile

    # Input stays f32 (cast to bf16 inside the kernel); pad only the tail
    # rows needed to make the grid divide evenly.
    x_in = x
    if B_pad != B:
        x_in = jnp.pad(x_in, ((0, B_pad - B), (0, 0)))

    # Flatten params: W bf16 (MXU inputs); hidden biases in act_dtype so the
    # bias-add + sigmoid stay in that dtype; final bias f32 (f32 output path).
    flat_params = []
    for li, (w, b) in enumerate(params):
        b_dtype = jnp.float32 if li == 4 else act_dtype
        flat_params.append(w.astype(jnp.bfloat16))
        flat_params.append(b.reshape(1, -1).astype(b_dtype))

    in_specs = [pl.BlockSpec((tile, SIZES[0]), lambda i: (i, 0))]
    for li in range(5):
        d_in, d_out = SIZES[li], SIZES[li + 1]
        # Weights / biases: full-array blocks, resident in VMEM every step.
        in_specs.append(pl.BlockSpec((d_in, d_out), lambda i: (0, 0)))
        in_specs.append(pl.BlockSpec((1, d_out), lambda i: (0, 0)))

    out_spec = pl.BlockSpec((tile, SIZES[-1]), lambda i: (i, 0))

    # Advisory cost estimate for XLA scheduling.
    flops_per_row = 2 * sum(SIZES[i] * SIZES[i + 1] for i in range(5))
    transc_per_row = sum(SIZES[1:5])  # one tanh per hidden unit
    weight_bytes = sum(SIZES[i] * SIZES[i + 1] * 2 + SIZES[i + 1] * 4
                       for i in range(5))
    cost = pl.CostEstimate(
        flops=flops_per_row * B_pad,
        transcendentals=transc_per_row * B_pad,
        bytes_accessed=B_pad * (SIZES[0] * 4 + SIZES[-1] * 4)
        + n_steps * weight_bytes,
    )

    kernel = functools.partial(_dir_net_kernel, act_dtype=act_dtype)

    out = pl.pallas_call(
        kernel,
        out_shape=jax.ShapeDtypeStruct((B_pad, SIZES[-1]), jnp.float32),
        grid_spec=pltpu.PrefetchScalarGridSpec(
            num_scalar_prefetch=0,
            grid=(n_steps,),
            in_specs=in_specs,
            out_specs=out_spec,
        ),
        compiler_params=pltpu.CompilerParams(
            dimension_semantics=("parallel",),
        ),
        cost_estimate=cost,
    )(x_in, *flat_params)

    return out[:B]


def init_params(key):
    """Deterministic init mimicking PyTorch's U(-1/sqrt(fan_in), 1/sqrt(fan_in))."""
    params = []
    for li in range(5):
        d_in, d_out = SIZES[li], SIZES[li + 1]
        key, kw, kb = jax.random.split(key, 3)
        bound = 1.0 / jnp.sqrt(jnp.float32(d_in))
        # Stored as (in, out): x @ W == PyTorch's x @ W_torch.T.
        w = jax.random.uniform(kw, (d_in, d_out), jnp.float32, -bound, bound)
        b = jax.random.uniform(kb, (1, d_out), jnp.float32, -bound, bound)
        params.append((w, b))
    return params


def dir_net_reference(x, params):
    """Pure-JAX f32 reference for correctness checking."""
    h = x
    for li, (w, b) in enumerate(params):
        h = h @ w + b
        if li < 4:
            h = jax.nn.sigmoid(h)
    return h


if __name__ == "__main__":
    key = jax.random.PRNGKey(0)
    kp, kx = jax.random.split(key)

    params = init_params(kp)

    # Two cases: a tiny non-aligned batch (exercises the 1-step pad path) and
    # a medium batch (exercises the balanced >=2-step / megacore path).
    for batch in (10, 300):
        kx, k = jax.random.split(kx)
        x = jax.random.normal(k, (batch, SIZES[0]), jnp.float32)

        out = jax.block_until_ready(dir_net_forward(x, params))
        ref = dir_net_reference(x, params)

        assert out.shape == (batch, 1), out.shape
        # bf16 matmul inputs (and bf16 activations on v6e/v7x) vs f32 ref.
        max_err = float(jnp.max(jnp.abs(out - ref)))
        assert max_err < 2e-2, f"batch={batch} max abs err {max_err}"

    print("KERNEL_OK")
</pallas_src>

<mosaic_0001>
module attributes {stable_mosaic.version = 11 : i64} {
  func.func @_dir_net_kernel(%arg0: i32, %arg1: memref<16x350xf32, #tpu.memory_space<vmem>>, %arg2: memref<350x150xbf16, #tpu.memory_space<vmem>>, %arg3: memref<1x150xf32, #tpu.memory_space<vmem>>, %arg4: memref<150x50xbf16, #tpu.memory_space<vmem>>, %arg5: memref<1x50xf32, #tpu.memory_space<vmem>>, %arg6: memref<50x15xbf16, #tpu.memory_space<vmem>>, %arg7: memref<1x15xf32, #tpu.memory_space<vmem>>, %arg8: memref<15x5xbf16, #tpu.memory_space<vmem>>, %arg9: memref<1x5xf32, #tpu.memory_space<vmem>>, %arg10: memref<5x1xbf16, #tpu.memory_space<vmem>>, %arg11: memref<1x1xf32, #tpu.memory_space<vmem>>, %arg12: memref<16x1xf32, #tpu.memory_space<vmem>>) attributes {dimension_semantics = [#tpu.dimension_semantics<parallel>], iteration_bounds = array<i64: 1>, scalar_prefetch = 0 : i64, scratch_operands = 0 : i64, tpu.core_type = #tpu.core_type<tc>, window_params = [{transform_indices = @transform_0, window_bounds = array<i64: 16, 350>}, {pipeline_mode = #tpu.pipeline_mode<synchronous>, transform_indices = @transform_1, window_bounds = array<i64: 350, 150>}, {pipeline_mode = #tpu.pipeline_mode<synchronous>, transform_indices = @transform_2, window_bounds = array<i64: 1, 150>}, {pipeline_mode = #tpu.pipeline_mode<synchronous>, transform_indices = @transform_3, window_bounds = array<i64: 150, 50>}, {pipeline_mode = #tpu.pipeline_mode<synchronous>, transform_indices = @transform_4, window_bounds = array<i64: 1, 50>}, {pipeline_mode = #tpu.pipeline_mode<synchronous>, transform_indices = @transform_5, window_bounds = array<i64: 50, 15>}, {pipeline_mode = #tpu.pipeline_mode<synchronous>, transform_indices = @transform_6, window_bounds = array<i64: 1, 15>}, {pipeline_mode = #tpu.pipeline_mode<synchronous>, transform_indices = @transform_7, window_bounds = array<i64: 15, 5>}, {pipeline_mode = #tpu.pipeline_mode<synchronous>, transform_indices = @transform_8, window_bounds = array<i64: 1, 5>}, {pipeline_mode = #tpu.pipeline_mode<synchronous>, transform_indices = @transform_9, window_bounds = array<i64: 5, 1>}, {pipeline_mode = #tpu.pipeline_mode<synchronous>, transform_indices = @transform_10, window_bounds = array<i64: 1, 1>}, {transform_indices = @transform_11, window_bounds = array<i64: 16, 1>}]} {
    %c0 = arith.constant 0 : index
    %c0_0 = arith.constant 0 : index
    %0 = vector.load %arg1[%c0, %c0_0] : memref<16x350xf32, #tpu.memory_space<vmem>>, vector<16x350xf32>
    %1 = arith.truncf %0 : vector<16x350xf32> to vector<16x350xbf16>
    %c0_1 = arith.constant 0 : index
    %c0_2 = arith.constant 0 : index
    %2 = vector.load %arg2[%c0_1, %c0_2] : memref<350x150xbf16, #tpu.memory_space<vmem>>, vector<350x150xbf16>
    %cst = arith.constant dense<0.000000e+00> : vector<16x150xf32>
    %3 = tpu.matmul %1, %2, %cst {dimension_numbers = #tpu.dot_dimension_numbers<[1], [0], [0], [1], [0, 0, 1, 1], [], []>} : vector<16x350xbf16>, vector<350x150xbf16>, vector<16x150xf32> -> vector<16x150xf32>
    %c0_3 = arith.constant 0 : index
    %c0_4 = arith.constant 0 : index
    %4 = vector.load %arg3[%c0_3, %c0_4] : memref<1x150xf32, #tpu.memory_space<vmem>>, vector<1x150xf32>
    %5 = vector.broadcast %4 : vector<1x150xf32> to vector<16x150xf32>
    %6 = arith.addf %3, %5 : vector<16x150xf32>
    %cst_5 = arith.constant 5.000000e-01 : f32
    %7 = vector.broadcast %cst_5 : f32 to vector<16x150xf32>
    %8 = arith.mulf %7, %6 : vector<16x150xf32>
    %9 = math.tanh %8 : vector<16x150xf32>
    %cst_6 = arith.constant 5.000000e-01 : f32
    %10 = vector.broadcast %cst_6 : f32 to vector<16x150xf32>
    %11 = arith.mulf %10, %9 : vector<16x150xf32>
    %cst_7 = arith.constant 5.000000e-01 : f32
    %12 = vector.broadcast %cst_7 : f32 to vector<16x150xf32>
    %13 = arith.addf %11, %12 : vector<16x150xf32>
    %14 = arith.truncf %13 : vector<16x150xf32> to vector<16x150xbf16>
    %c0_8 = arith.constant 0 : index
    %c0_9 = arith.constant 0 : index
    %15 = vector.load %arg4[%c0_8, %c0_9] : memref<150x50xbf16, #tpu.memory_space<vmem>>, vector<150x50xbf16>
    %cst_10 = arith.constant dense<0.000000e+00> : vector<16x50xf32>
    %16 = tpu.matmul %14, %15, %cst_10 {dimension_numbers = #tpu.dot_dimension_numbers<[1], [0], [0], [1], [0, 0, 1, 1], [], []>} : vector<16x150xbf16>, vector<150x50xbf16>, vector<16x50xf32> -> vector<16x50xf32>
    %c0_11 = arith.constant 0 : index
    %c0_12 = arith.constant 0 : index
    %17 = vector.load %arg5[%c0_11, %c0_12] : memref<1x50xf32, #tpu.memory_space<vmem>>, vector<1x50xf32>
    %18 = vector.broadcast %17 : vector<1x50xf32> to vector<16x50xf32>
    %19 = arith.addf %16, %18 : vector<16x50xf32>
    %cst_13 = arith.constant 5.000000e-01 : f32
    %20 = vector.broadcast %cst_13 : f32 to vector<16x50xf32>
    %21 = arith.mulf %20, %19 : vector<16x50xf32>
    %22 = math.tanh %21 : vector<16x50xf32>
    %cst_14 = arith.constant 5.000000e-01 : f32
    %23 = vector.broadcast %cst_14 : f32 to vector<16x50xf32>
    %24 = arith.mulf %23, %22 : vector<16x50xf32>
    %cst_15 = arith.constant 5.000000e-01 : f32
    %25 = vector.broadcast %cst_15 : f32 to vector<16x50xf32>
    %26 = arith.addf %24, %25 : vector<16x50xf32>
    %27 = arith.truncf %26 : vector<16x50xf32> to vector<16x50xbf16>
    %c0_16 = arith.constant 0 : index
    %c0_17 = arith.constant 0 : index
    %28 = vector.load %arg6[%c0_16, %c0_17] : memref<50x15xbf16, #tpu.memory_space<vmem>>, vector<50x15xbf16>
    %cst_18 = arith.constant dense<0.000000e+00> : vector<16x15xf32>
    %29 = tpu.matmul %27, %28, %cst_18 {dimension_numbers = #tpu.dot_dimension_numbers<[1], [0], [0], [1], [0, 0, 1, 1], [], []>} : vector<16x50xbf16>, vector<50x15xbf16>, vector<16x15xf32> -> vector<16x15xf32>
    %c0_19 = arith.constant 0 : index
    %c0_20 = arith.constant 0 : index
    %30 = vector.load %arg7[%c0_19, %c0_20] : memref<1x15xf32, #tpu.memory_space<vmem>>, vector<1x15xf32>
    %31 = vector.broadcast %30 : vector<1x15xf32> to vector<16x15xf32>
    %32 = arith.addf %29, %31 : vector<16x15xf32>
    %cst_21 = arith.constant 5.000000e-01 : f32
    %33 = vector.broadcast %cst_21 : f32 to vector<16x15xf32>
    %34 = arith.mulf %33, %32 : vector<16x15xf32>
    %35 = math.tanh %34 : vector<16x15xf32>
    %cst_22 = arith.constant 5.000000e-01 : f32
    %36 = vector.broadcast %cst_22 : f32 to vector<16x15xf32>
    %37 = arith.mulf %36, %35 : vector<16x15xf32>
    %cst_23 = arith.constant 5.000000e-01 : f32
    %38 = vector.broadcast %cst_23 : f32 to vector<16x15xf32>
    %39 = arith.addf %37, %38 : vector<16x15xf32>
    %40 = arith.truncf %39 : vector<16x15xf32> to vector<16x15xbf16>
    %c0_24 = arith.constant 0 : index
    %c0_25 = arith.constant 0 : index
    %41 = vector.load %arg8[%c0_24, %c0_25] : memref<15x5xbf16, #tpu.memory_space<vmem>>, vector<15x5xbf16>
    %cst_26 = arith.constant dense<0.000000e+00> : vector<16x5xf32>
    %42 = tpu.matmul %40, %41, %cst_26 {dimension_numbers = #tpu.dot_dimension_numbers<[1], [0], [0], [1], [0, 0, 1, 1], [], []>} : vector<16x15xbf16>, vector<15x5xbf16>, vector<16x5xf32> -> vector<16x5xf32>
    %c0_27 = arith.constant 0 : index
    %c0_28 = arith.constant 0 : index
    %43 = vector.load %arg9[%c0_27, %c0_28] : memref<1x5xf32, #tpu.memory_space<vmem>>, vector<1x5xf32>
    %44 = vector.broadcast %43 : vector<1x5xf32> to vector<16x5xf32>
    %45 = arith.addf %42, %44 : vector<16x5xf32>
    %cst_29 = arith.constant 5.000000e-01 : f32
    %46 = vector.broadcast %cst_29 : f32 to vector<16x5xf32>
    %47 = arith.mulf %46, %45 : vector<16x5xf32>
    %48 = math.tanh %47 : vector<16x5xf32>
    %cst_30 = arith.constant 5.000000e-01 : f32
    %49 = vector.broadcast %cst_30 : f32 to vector<16x5xf32>
    %50 = arith.mulf %49, %48 : vector<16x5xf32>
    %cst_31 = arith.constant 5.000000e-01 : f32
    %51 = vector.broadcast %cst_31 : f32 to vector<16x5xf32>
    %52 = arith.addf %50, %51 : vector<16x5xf32>
    %53 = arith.truncf %52 : vector<16x5xf32> to vector<16x5xbf16>
    %c0_32 = arith.constant 0 : index
    %c0_33 = arith.constant 0 : index
    %54 = vector.load %arg10[%c0_32, %c0_33] : memref<5x1xbf16, #tpu.memory_space<vmem>>, vector<5x1xbf16>
    %cst_34 = arith.constant dense<0.000000e+00> : vector<16x1xf32>
    %55 = tpu.matmul %53, %54, %cst_34 {dimension_numbers = #tpu.dot_dimension_numbers<[1], [0], [0], [1], [0, 0, 1, 1], [], []>} : vector<16x5xbf16>, vector<5x1xbf16>, vector<16x1xf32> -> vector<16x1xf32>
    %c0_35 = arith.constant 0 : index
    %c0_36 = arith.constant 0 : index
    %56 = vector.load %arg11[%c0_35, %c0_36] : memref<1x1xf32, #tpu.memory_space<vmem>>, vector<1x1xf32>
    %57 = vector.broadcast %56 : vector<1x1xf32> to vector<16x1xf32>
    %58 = arith.addf %55, %57 : vector<16x1xf32>
    %c0_37 = arith.constant 0 : index
    %c0_38 = arith.constant 0 : index
    %59 = vector.load %arg12[%c0_37, %c0_38] : memref<16x1xf32, #tpu.memory_space<vmem>>, vector<16x1xf32>
    tpu.vector_store %arg12[%c0_37, %c0_38], %58 {strides = array<i32>} : memref<16x1xf32, #tpu.memory_space<vmem>>, vector<16x1xf32>,
    return
  }
  func.func @transform_0(%arg0: i32) -> (i32, i32) {
    %c0_i32 = arith.constant 0 : i32
    %c0_i32_0 = arith.constant 0 : i32
    return %arg0, %c0_i32 : i32, i32
  }
  func.func @transform_1(%arg0: i32) -> (i32, i32) {
    %c0_i32 = arith.constant 0 : i32
    %c0_i32_0 = arith.constant 0 : i32
    %c0_i32_1 = arith.constant 0 : i32
    return %c0_i32, %c0_i32_0 : i32, i32
  }
  func.func @transform_2(%arg0: i32) -> (i32, i32) {
    %c0_i32 = arith.constant 0 : i32
    %c0_i32_0 = arith.constant 0 : i32
    %c0_i32_1 = arith.constant 0 : i32
    return %c0_i32, %c0_i32_0 : i32, i32
  }
  func.func @transform_3(%arg0: i32) -> (i32, i32) {
    %c0_i32 = arith.constant 0 : i32
    %c0_i32_0 = arith.constant 0 : i32
    %c0_i32_1 = arith.constant 0 : i32
    return %c0_i32, %c0_i32_0 : i32, i32
  }
  func.func @transform_4(%arg0: i32) -> (i32, i32) {
    %c0_i32 = arith.constant 0 : i32
    %c0_i32_0 = arith.constant 0 : i32
    %c0_i32_1 = arith.constant 0 : i32
    return %c0_i32, %c0_i32_0 : i32, i32
  }
  func.func @transform_5(%arg0: i32) -> (i32, i32) {
    %c0_i32 = arith.constant 0 : i32
    %c0_i32_0 = arith.constant 0 : i32
    %c0_i32_1 = arith.constant 0 : i32
    return %c0_i32, %c0_i32_0 : i32, i32
  }
  func.func @transform_6(%arg0: i32) -> (i32, i32) {
    %c0_i32 = arith.constant 0 : i32
    %c0_i32_0 = arith.constant 0 : i32
    %c0_i32_1 = arith.constant 0 : i32
    return %c0_i32, %c0_i32_0 : i32, i32
  }
  func.func @transform_7(%arg0: i32) -> (i32, i32) {
    %c0_i32 = arith.constant 0 : i32
    %c0_i32_0 = arith.constant 0 : i32
    %c0_i32_1 = arith.constant 0 : i32
    return %c0_i32, %c0_i32_0 : i32, i32
  }
  func.func @transform_8(%arg0: i32) -> (i32, i32) {
    %c0_i32 = arith.constant 0 : i32
    %c0_i32_0 = arith.constant 0 : i32
    %c0_i32_1 = arith.constant 0 : i32
    return %c0_i32, %c0_i32_0 : i32, i32
  }
  func.func @transform_9(%arg0: i32) -> (i32, i32) {
    %c0_i32 = arith.constant 0 : i32
    %c0_i32_0 = arith.constant 0 : i32
    %c0_i32_1 = arith.constant 0 : i32
    return %c0_i32, %c0_i32_0 : i32, i32
  }
  func.func @transform_10(%arg0: i32) -> (i32, i32) {
    %c0_i32 = arith.constant 0 : i32
    %c0_i32_0 = arith.constant 0 : i32
    %c0_i32_1 = arith.constant 0 : i32
    return %c0_i32, %c0_i32_0 : i32, i32
  }
  func.func @transform_11(%arg0: i32) -> (i32, i32) {
    %c0_i32 = arith.constant 0 : i32
    %c0_i32_0 = arith.constant 0 : i32
    return %arg0, %c0_i32 : i32, i32
  }
}

</mosaic_0001>

<llo_original>
// kernel: dir_net_forward.1
$region0: #{dir_net_forward.1}
  #allocation0 [shape = 'u32[]', space=smem, size = 0x4, offset = 0x4, fixed_abs, tag = 'smem constant byte address 0x4 - core index']
  #allocation1 [shape = 'u32[144,128]{1,0:T(1,128)}', space=vmem, size = 0x12000, scoped, tag = 'internal scratch']
  #allocation2 [shape = 'f32[1,1]{1,0:T(1,128)S(1)}', space=vmem, size = 0x200, scoped, tag = 'scoped memory for dir_net_forward.1']
  %s0 = inlined_call_operand.vmem [shape: f32[16,350], index: 0, kind: input, shape index: {}]
  %s1 = inlined_call_operand.vmem [shape: bf16[350,150], index: 1, kind: input, shape index: {}]
  %s2 = inlined_call_operand.vmem [shape: f32[1,150], index: 2, kind: input, shape index: {}]
  %s3 = inlined_call_operand.vmem [shape: bf16[150,50], index: 3, kind: input, shape index: {}]
  %s4 = inlined_call_operand.vmem [shape: f32[1,50], index: 4, kind: input, shape index: {}]
  %s5 = inlined_call_operand.vmem [shape: bf16[50,15], index: 5, kind: input, shape index: {}]
  %s6 = inlined_call_operand.vmem [shape: f32[1,15], index: 6, kind: input, shape index: {}]
  %s7 = inlined_call_operand.vmem [shape: bf16[15,5], index: 7, kind: input, shape index: {}]
  %s8 = inlined_call_operand.vmem [shape: f32[1,5], index: 8, kind: input, shape index: {}]
  %s9 = inlined_call_operand.vmem [shape: bf16[5,1], index: 9, kind: input, shape index: {}]
  %s10 = inlined_call_operand.<no memory space> [shape: f32[1,1], index: 10, kind: input, shape index: {}]
  %s11 = inlined_call_operand.vmem [shape: f32[16,1], index: 11, kind: output, shape index: {}]
  %s12 = sld [smem:[#allocation0]]
  $region54: #{dir_net_forward.1} parent=0
    _
  %s14 = ssub.s32 1, %s12
  %s15 = scalar_select 0, %s14, %s12
  %v16 = vstv %s10
  %17 = vst [vmem:[#allocation2] sm:$0x1] %v16
  // Predicated region
  $region2: #{dir_net_forward.1} parent=0 // pred_check
    _
  $region3: #{dir_net_forward.1} parent=0 // pred_check_branch
    %19 = sbr.rel (0) target = $region5
  $region4: #{dir_net_forward.1} parent=0 // pred_region
    _
  $region5: #{dir_net_forward.1} parent=0 // pred_fallthru
    _
  // Predicated region
  $region6: #{dir_net_forward.1} parent=0 // pred_check
    _
  $region7: #{dir_net_forward.1} parent=0 // pred_check_branch
    %21 = sbr.rel (0) target = $region9
  $region8: #{dir_net_forward.1} parent=0 // pred_region
    _
  $region9: #{dir_net_forward.1} parent=0 // pred_fallthru
    _
  // Predicated region
  $region10: #{dir_net_forward.1} parent=0 // pred_check
    _
  $region11: #{dir_net_forward.1} parent=0 // pred_check_branch
    %23 = sbr.rel (0) target = $region13
  $region12: #{dir_net_forward.1} parent=0 // pred_region
    _
  $region13: #{dir_net_forward.1} parent=0 // pred_fallthru
    _
  // Predicated region
  $region14: #{dir_net_forward.1} parent=0 // pred_check
    _
  $region15: #{dir_net_forward.1} parent=0 // pred_check_branch
    %25 = sbr.rel (0) target = $region17
  $region16: #{dir_net_forward.1} parent=0 // pred_region
    _
  $region17: #{dir_net_forward.1} parent=0 // pred_fallthru
    _
  // Predicated region
  $region18: #{dir_net_forward.1} parent=0 // pred_check
    _
  $region19: #{dir_net_forward.1} parent=0 // pred_check_branch
    %27 = sbr.rel (0) target = $region21
  $region20: #{dir_net_forward.1} parent=0 // pred_region
    _
  $region21: #{dir_net_forward.1} parent=0 // pred_fallthru
    _
  // Predicated region
  $region22: #{dir_net_forward.1} parent=0 // pred_check
    _
  $region23: #{dir_net_forward.1} parent=0 // pred_check_branch
    %29 = sbr.rel (0) target = $region25
  $region24: #{dir_net_forward.1} parent=0 // pred_region
    _
  $region25: #{dir_net_forward.1} parent=0 // pred_fallthru
    _
  // Predicated region
  $region26: #{dir_net_forward.1} parent=0 // pred_check
    _
  $region27: #{dir_net_forward.1} parent=0 // pred_check_branch
    %31 = sbr.rel (0) target = $region29
  $region28: #{dir_net_forward.1} parent=0 // pred_region
    _
  $region29: #{dir_net_forward.1} parent=0 // pred_fallthru
    _
  // Predicated region
  $region30: #{dir_net_forward.1} parent=0 // pred_check
    _
  $region31: #{dir_net_forward.1} parent=0 // pred_check_branch
    %33 = sbr.rel (0) target = $region33
  $region32: #{dir_net_forward.1} parent=0 // pred_region
    _
  $region33: #{dir_net_forward.1} parent=0 // pred_fallthru
    _
  // Predicated region
  $region34: #{dir_net_forward.1} parent=0 // pred_check
    _
  $region35: #{dir_net_forward.1} parent=0 // pred_check_branch
    %35 = sbr.rel (0) target = $region37
  $region36: #{dir_net_forward.1} parent=0 // pred_region
    _
  $region37: #{dir_net_forward.1} parent=0 // pred_fallthru
    _
  // Predicated region
  $region38: #{dir_net_forward.1} parent=0 // pred_check
    _
  $region39: #{dir_net_forward.1} parent=0 // pred_check_branch
    %37 = sbr.rel (0) target = $region41
  $region40: #{dir_net_forward.1} parent=0 // pred_region
    _
  $region41: #{dir_net_forward.1} parent=0 // pred_fallthru
    _
  // Predicated region
  $region42: #{dir_net_forward.1} parent=0 // pred_check
    _
  $region43: #{dir_net_forward.1} parent=0 // pred_check_branch
    %39 = sbr.rel (0) target = $region45
  $region44: #{dir_net_forward.1} parent=0 // pred_region
    _
  $region45: #{dir_net_forward.1} parent=0 // pred_fallthru
    _
  %v41 = vld [vmem:[%s0] sm:$0xff]
  %v42 = vld [vmem:[%s0 + $0x8] sm:$0xff]
  %v43 = vld [vmem:[%s0 + $0x10] sm:$0xff]
  %v44 = vld [vmem:[%s0 + $0x18] sm:$0xff]
  %v45 = vld [vmem:[%s0 + $0x20] sm:$0xff]
  %v46 = vld [vmem:[%s0 + $0x28] sm:$0xff]
  %v47 = vpack.c.bf16 %v44, %v41
  %v48 = vpack.c.bf16 %v45, %v42
  %v49 = vpack.c.bf16 %v46, %v43
  %v50 = vld [vmem:[%s1] sm:$0xff]
  %v51 = vld [vmem:[%s1 + $0x8] sm:$0xff]
  %v52 = vld [vmem:[%s1 + $0x10] sm:$0xff]
  %v53 = vld [vmem:[%s1 + $0x18] sm:$0xff]
  %v54 = vld [vmem:[%s1 + $0x20] sm:$0xff]
  %v55 = vld [vmem:[%s1 + $0x28] sm:$0xff]
  %v56 = vld [vmem:[%s1 + $0x30] sm:$0xff]
  %v57 = vld [vmem:[%s1 + $0x38] sm:$0xff]
  %v58 = vld [vmem:[%s1 + $0x40] sm:$0xff]
  %v59 = vld [vmem:[%s1 + $0x48] sm:$0xff]
  %v60 = vld [vmem:[%s1 + $0x50] sm:$0xff]
  %v61 = vld [vmem:[%s1 + $0x58] sm:$0xff]
  %v62 = vld [vmem:[%s1 + $0x60] sm:$0xff]
  %v63 = vld [vmem:[%s1 + $0x68] sm:$0xff]
  %v64 = vld [vmem:[%s1 + $0x70] sm:$0xff]
  %v65 = vld [vmem:[%s1 + $0x78] sm:$0xff]
  %v66 = vld [vmem:[%s1 + $0x80] sm:$0xff]
  %v67 = vld [vmem:[%s1 + $0x88] sm:$0xff]
  %v68 = vld [vmem:[%s1 + $0x90] sm:$0xff]
  %v69 = vld [vmem:[%s1 + $0x98] sm:$0xff]
  %v70 = vld [vmem:[%s1 + $0xa0] sm:$0xff]
  %v71 = vld [vmem:[%s1 + $0xa8] sm:$0xff]
  %v72 = vld [vmem:[%s1 + $0xb0] sm:$0xff]
  %v73 = vld [vmem:[%s1 + $0xb8] sm:$0xff]
  %v74 = vld [vmem:[%s1 + $0xc0] sm:$0xff]
  %v75 = vld [vmem:[%s1 + $0xc8] sm:$0xff]
  %v76 = vld [vmem:[%s1 + $0xd0] sm:$0xff]
  %v77 = vld [vmem:[%s1 + $0xd8] sm:$0xff]
  %v78 = vld [vmem:[%s1 + $0xe0] sm:$0xff]
  %v79 = vld [vmem:[%s1 + $0xe8] sm:$0xff]
  %v80 = vld [vmem:[%s1 + $0xf0] sm:$0xff]
  %v81 = vld [vmem:[%s1 + $0xf8] sm:$0xff]
  %v82 = vld [vmem:[%s1 + $0x100] sm:$0xff]
  %v83 = vld [vmem:[%s1 + $0x108] sm:$0xff]
  %v84 = vld [vmem:[%s1 + $0x110] sm:$0xff]
  %v85 = vld [vmem:[%s1 + $0x118] sm:$0xff]
  %v86 = vld [vmem:[%s1 + $0x120] sm:$0xff]
  %v87 = vld [vmem:[%s1 + $0x128] sm:$0xff]
  %v88 = vld [vmem:[%s1 + $0x130] sm:$0xff]
  %v89 = vld [vmem:[%s1 + $0x138] sm:$0xff]
  %v90 = vld [vmem:[%s1 + $0x140] sm:$0xff]
  %v91 = vld [vmem:[%s1 + $0x148] sm:$0xff]
  %v92 = vld [vmem:[%s1 + $0x150] sm:$0xff]
  %v93 = vld [vmem:[%s1 + $0x158] sm:$0x77]
  %v94 = vld [vmem:[%s2] sm:$0x3]
  %v96 = vlaneseq
  %v97 = vshrl.u32 %v96, 7
  %v98 = vsub.s32 0, %v97
  %v99 = vrot.slane %v94, %v98
  %v100 = vlaneseq
  %v101 = vshrl.u32 %v100, 7
  %v102 = vsub.s32 1, %v101
  %v103 = vrot.slane %v94, %v102
  %v150 = vunpack.c.l.b16 %v50
  %v151 = vunpack.c.h.b16 %v50
  %v152 = vunpack.c.l.b16 %v51
  %v153 = vunpack.c.h.b16 %v51
  %v154 = vunpack.c.l.b16 %v52
  %v155 = vunpack.c.h.b16 %v52
  %v156 = vunpack.c.l.b16 %v53
  %v157 = vunpack.c.h.b16 %v53
  %v158 = vunpack.c.l.b16 %v54
  %v159 = vunpack.c.h.b16 %v54
  %v160 = vunpack.c.l.b16 %v55
  %v161 = vunpack.c.h.b16 %v55
  %v162 = vunpack.c.l.b16 %v56
  %v163 = vunpack.c.h.b16 %v56
  %v164 = vunpack.c.l.b16 %v57
  %v165 = vunpack.c.h.b16 %v57
  %v166 = vunpack.c.l.b16 %v58
  %v167 = vunpack.c.h.b16 %v58
  %v168 = vunpack.c.l.b16 %v59
  %v169 = vunpack.c.h.b16 %v59
  %v170 = vunpack.c.l.b16 %v60
  %v171 = vunpack.c.h.b16 %v60
  %v172 = vunpack.c.l.b16 %v61
  %v173 = vunpack.c.h.b16 %v61
  %v174 = vunpack.c.l.b16 %v62
  %v175 = vunpack.c.h.b16 %v62
  %v176 = vunpack.c.l.b16 %v63
  %v177 = vunpack.c.h.b16 %v63
  %v178 = vunpack.c.l.b16 %v64
  %v179 = vunpack.c.h.b16 %v64
  %v180 = vunpack.c.l.b16 %v65
  %v181 = vunpack.c.h.b16 %v65
  %v182 = vunpack.c.l.b16 %v66
  %v183 = vunpack.c.h.b16 %v66
  %v184 = vunpack.c.l.b16 %v67
  %v185 = vunpack.c.h.b16 %v67
  %v186 = vunpack.c.l.b16 %v68
  %v187 = vunpack.c.h.b16 %v68
  %v188 = vunpack.c.l.b16 %v69
  %v189 = vunpack.c.h.b16 %v69
  %v190 = vunpack.c.l.b16 %v70
  %v191 = vunpack.c.h.b16 %v70
  %v192 = vunpack.c.l.b16 %v71
  %v193 = vunpack.c.h.b16 %v71
  %v194 = vunpack.c.l.b16 %v72
  %v195 = vunpack.c.h.b16 %v72
  %v196 = vunpack.c.l.b16 %v73
  %v197 = vunpack.c.h.b16 %v73
  %v198 = vunpack.c.l.b16 %v74
  %v199 = vunpack.c.h.b16 %v74
  %v200 = vunpack.c.l.b16 %v75
  %v201 = vunpack.c.h.b16 %v75
  %v202 = vunpack.c.l.b16 %v76
  %v203 = vunpack.c.h.b16 %v76
  %v204 = vunpack.c.l.b16 %v77
  %v205 = vunpack.c.h.b16 %v77
  %v206 = vunpack.c.l.b16 %v78
  %v207 = vunpack.c.h.b16 %v78
  %v208 = vunpack.c.l.b16 %v79
  %v209 = vunpack.c.h.b16 %v79
  %v210 = vunpack.c.l.b16 %v80
  %v211 = vunpack.c.h.b16 %v80
  %v212 = vunpack.c.l.b16 %v81
  %v213 = vunpack.c.h.b16 %v81
  %v214 = vunpack.c.l.b16 %v82
  %v215 = vunpack.c.h.b16 %v82
  %v216 = vunpack.c.l.b16 %v83
  %v217 = vunpack.c.h.b16 %v83
  %v218 = vunpack.c.l.b16 %v84
  %v219 = vunpack.c.h.b16 %v84
  %v220 = vunpack.c.l.b16 %v85
  %v221 = vunpack.c.h.b16 %v85
  %v222 = vunpack.c.l.b16 %v86
  %v223 = vunpack.c.h.b16 %v86
  %v224 = vunpack.c.l.b16 %v87
  %v225 = vunpack.c.h.b16 %v87
  %v226 = vunpack.c.l.b16 %v88
  %v227 = vunpack.c.h.b16 %v88
  %v228 = vunpack.c.l.b16 %v89
  %v229 = vunpack.c.h.b16 %v89
  %v230 = vunpack.c.l.b16 %v90
  %v231 = vunpack.c.h.b16 %v90
  %v232 = vunpack.c.l.b16 %v91
  %v233 = vunpack.c.h.b16 %v91
  %v234 = vunpack.c.l.b16 %v92
  %v235 = vunpack.c.h.b16 %v92
  %v236 = vunpack.c.l.b16 %v93
  %v237 = vunpack.c.h.b16 %v93
  %v238 = vpack.c.b16 %v152, %v150
  %v239 = vpack.c.b16 %v153, %v151
  %v240 = vpack.c.b16 %v156, %v154
  %v241 = vpack.c.b16 %v157, %v155
  %v242 = vpack.c.b16 %v160, %v158
  %v243 = vpack.c.b16 %v161, %v159
  %v244 = vpack.c.b16 %v164, %v162
  %v245 = vpack.c.b16 %v165, %v163
  %v246 = vpack.c.b16 %v168, %v166
  %v247 = vpack.c.b16 %v169, %v167
  %v248 = vpack.c.b16 %v172, %v170
  %v249 = vpack.c.b16 %v173, %v171
  %v250 = vpack.c.b16 %v176, %v174
  %v251 = vpack.c.b16 %v177, %v175
  %v252 = vpack.c.b16 %v180, %v178
  %v253 = vpack.c.b16 %v181, %v179
  %v254 = vpack.c.b16 %v184, %v182
  %v255 = vpack.c.b16 %v185, %v183
  %v256 = vpack.c.b16 %v188, %v186
  %v257 = vpack.c.b16 %v189, %v187
  %v258 = vpack.c.b16 %v192, %v190
  %v259 = vpack.c.b16 %v193, %v191
  %v260 = vpack.c.b16 %v196, %v194
  %v261 = vpack.c.b16 %v197, %v195
  %v262 = vpack.c.b16 %v200, %v198
  %v263 = vpack.c.b16 %v201, %v199
  %v264 = vpack.c.b16 %v204, %v202
  %v265 = vpack.c.b16 %v205, %v203
  %v266 = vpack.c.b16 %v208, %v206
  %v267 = vpack.c.b16 %v209, %v207
  %v268 = vpack.c.b16 %v212, %v210
  %v269 = vpack.c.b16 %v213, %v211
  %v270 = vpack.c.b16 %v216, %v214
  %v271 = vpack.c.b16 %v217, %v215
  %v272 = vpack.c.b16 %v220, %v218
  %v273 = vpack.c.b16 %v221, %v219
  %v274 = vpack.c.b16 %v224, %v222
  %v275 = vpack.c.b16 %v225, %v223
  %v276 = vpack.c.b16 %v228, %v226
  %v277 = vpack.c.b16 %v229, %v227
  %v278 = vpack.c.b16 %v232, %v230
  %v279 = vpack.c.b16 %v233, %v231
  %v280 = vpack.c.b16 %v236, %v234
  %v281 = vpack.c.b16 %v237, %v235
  %vm324 = vcmask 769024
  %v326 = vsel %vm324, %v49, 0
  %vm328 = vcmask 1046528
  %v330 = vsel %vm328, %v280, 0
  %v333 = vsel %vm328, %v281, 0
  %335 = vmatprep.subr.bf16.mxu0 %v239
  %336 = vmatpush1.bf16.msra.mxu0 %v238
  %337 = vmatprep.subr.bf16.mxu0 %v241
  %338 = vmatpush1.bf16.msra.mxu0 %v240
  %339 = vmatprep.subr.bf16.mxu0 %v243
  %340 = vmatpush1.bf16.msra.mxu0 %v242
  %341 = vmatprep.subr.bf16.mxu0 %v245
  %342 = vmatpush1.bf16.msra.mxu0 %v244
  %343 = vmatprep.subr.bf16.mxu0 %v247
  %344 = vmatpush1.bf16.msra.mxu0 %v246
  %345 = vmatprep.subr.bf16.mxu0 %v249
  %346 = vmatpush1.bf16.msra.mxu0 %v248
  %347 = vmatprep.subr.bf16.mxu0 %v251
  %348 = vmatpush1.bf16.msra.mxu0 %v250
  %349 = vmatprep.subr.bf16.mxu0 %v253
  %350 = vmatpush1.bf16.msra.mxu0 %v252
  %351 = vmatprep.subr.bf16.mxu0 %v255
  %352 = vmatpush1.bf16.msra.mxu0 %v254
  %353 = vmatprep.subr.bf16.mxu0 %v257
  %354 = vmatpush1.bf16.msra.mxu0 %v256
  %355 = vmatprep.subr.bf16.mxu0 %v259
  %356 = vmatpush1.bf16.msra.mxu0 %v258
  %357 = vmatprep.subr.bf16.mxu0 %v261
  %358 = vmatpush1.bf16.msra.mxu0 %v260
  %359 = vmatprep.subr.bf16.mxu0 %v263
  %360 = vmatpush1.bf16.msra.mxu0 %v262
  %361 = vmatprep.subr.bf16.mxu0 %v265
  %362 = vmatpush1.bf16.msra.mxu0 %v264
  %363 = vmatprep.subr.bf16.mxu0 %v267
  %364 = vmatpush1.bf16.msra.mxu0 %v266
  %365 = vmatprep.subr.bf16.mxu0 %v269
  %366 = vmatpush1.bf16.msra.mxu0 %v268
  %367 = vmatprep.mubr.bf16.mxu0 %v48
  %368 = vmatmul.mubr.bf16.gmra.mrb[0].mxu0 %v47
  %v369 = vpop.f32.mrb[0].mxu0
  %v370 = vadd.f32 %v99, %v369
  %v371 = vpop.f32.mrb[0].mxu0
  %v372 = vadd.f32 %v103, %v371
  %v373 = vpop.f32.mrb[0].mxu0
  %v374 = vadd.f32 %v99, %v373
  %v375 = vpop.f32.mrb[0].mxu0
  %v376 = vadd.f32 %v103, %v375
  %377 = vdwg.mxu0
  %378 = vmatprep.subr.bf16.mxu0 %v271
  %379 = vmatpush1.bf16.msra.mxu0 %v270
  %380 = vmatprep.subr.bf16.mxu0 %v273
  %381 = vmatpush1.bf16.msra.mxu0 %v272
  %382 = vmatprep.subr.bf16.mxu0 %v275
  %383 = vmatpush1.bf16.msra.mxu0 %v274
  %384 = vmatprep.subr.bf16.mxu0 %v277
  %385 = vmatpush1.bf16.msra.mxu0 %v276
  %386 = vmatprep.subr.bf16.mxu0 %v279
  %387 = vmatpush1.bf16.msra.mxu0 %v278
  %388 = vmatprep.subr.bf16.mxu0 %v333
  %389 = vmatpush1.bf16.msra.mxu0 %v330
  %390 = vmatprep.subr.bf16.mxu0 0
  %391 = vmatpush1.bf16.msra.mxu0 0
  %392 = vmatprep.subr.bf16.mxu0 0
  %393 = vmatpush1.bf16.msra.mxu0 0
  %394 = vmatprep.subr.bf16.mxu0 0
  %395 = vmatpush1.bf16.msra.mxu0 0
  %396 = vmatprep.subr.bf16.mxu0 0
  %397 = vmatpush1.bf16.msra.mxu0 0
  %398 = vmatprep.subr.bf16.mxu0 0
  %399 = vmatpush1.bf16.msra.mxu0 0
  %400 = vmatprep.subr.bf16.mxu0 0
  %401 = vmatpush1.bf16.msra.mxu0 0
  %402 = vmatprep.subr.bf16.mxu0 0
  %403 = vmatpush1.bf16.msra.mxu0 0
  %404 = vmatprep.subr.bf16.mxu0 0
  %405 = vmatpush1.bf16.msra.mxu0 0
  %406 = vmatprep.subr.bf16.mxu0 0
  %407 = vmatpush1.bf16.msra.mxu0 0
  %408 = vmatprep.subr.bf16.mxu0 0
  %409 = vmatpush1.bf16.msra.mxu0 0
  %410 = vmatprep.mubr.bf16.mxu0 0
  %411 = vmatmul.mubr.bf16.gmra.mrb[0].mxu0 %v326
  %v412 = vpop.f32.mrb[0].mxu0
  %v413 = vadd.f32 %v370, %v412
  %v414 = vpop.f32.mrb[0].mxu0
  %v415 = vadd.f32 %v372, %v414
  %v416 = vpop.f32.mrb[0].mxu0
  %v417 = vadd.f32 %v374, %v416
  %v418 = vpop.f32.mrb[0].mxu0
  %v419 = vadd.f32 %v376, %v418
  %420 = vdwg.mxu0
  %v421 = vmul.f32 %v413, 0.5
  %v422 = vmul.f32 %v415, 0.5
  %v423 = vmul.f32 %v417, 0.5
  %v424 = vmul.f32 %v419, 0.5
  %v425 = vtanh.pop %v421
  %v426 = vtanh.pop %v422
  %v427 = vtanh.pop %v423
  %v428 = vtanh.pop %v424
  %v429 = vmul.f32 %v425, 0.5
  %v430 = vmul.f32 %v426, 0.5
  %v431 = vmul.f32 %v427, 0.5
  %v432 = vmul.f32 %v428, 0.5
  %v433 = vadd.f32 %v429, 0.5
  %v434 = vadd.f32 %v430, 0.5
  %v435 = vadd.f32 %v431, 0.5
  %v436 = vadd.f32 %v432, 0.5
  %v437 = vpack.c.bf16 %v435, %v433
  %v438 = vpack.c.bf16 %v436, %v434
  %v439 = vld [vmem:[%s3] sm:$0xf]
  %v440 = vld [vmem:[%s3 + $0x4] sm:$0xf]
  %v441 = vld [vmem:[%s3 + $0x8] sm:$0xf]
  %v442 = vld [vmem:[%s3 + $0xc] sm:$0xf]
  %v443 = vld [vmem:[%s3 + $0x10] sm:$0xf]
  %v444 = vld [vmem:[%s3 + $0x14] sm:$0xf]
  %v445 = vld [vmem:[%s3 + $0x18] sm:$0xf]
  %v446 = vld [vmem:[%s3 + $0x1c] sm:$0xf]
  %v447 = vld [vmem:[%s3 + $0x20] sm:$0xf]
  %v448 = vld [vmem:[%s3 + $0x24] sm:$0xf]
  %v449 = vld [vmem:[%s3 + $0x28] sm:$0xf]
  %v450 = vld [vmem:[%s3 + $0x2c] sm:$0xf]
  %v451 = vld [vmem:[%s3 + $0x30] sm:$0xf]
  %v452 = vld [vmem:[%s3 + $0x34] sm:$0xf]
  %v453 = vld [vmem:[%s3 + $0x38] sm:$0xf]
  %v454 = vld [vmem:[%s3 + $0x3c] sm:$0xf]
  %v455 = vld [vmem:[%s3 + $0x40] sm:$0xf]
  %v456 = vld [vmem:[%s3 + $0x44] sm:$0xf]
  %v457 = vld [vmem:[%s3 + $0x48] sm:$0x7]
  %v458 = vld [vmem:[%s4] sm:$0x1]
  %v460 = vlaneseq
  %v461 = vshrl.u32 %v460, 7
  %v462 = vsub.s32 0, %v461
  %v463 = vrot.slane %v458, %v462
  %v484 = vunpack.c.l.b16 %v439
  %v485 = vunpack.c.l.b16 %v440
  %v486 = vunpack.c.l.b16 %v441
  %v487 = vunpack.c.l.b16 %v442
  %v488 = vunpack.c.l.b16 %v443
  %v489 = vunpack.c.l.b16 %v444
  %v490 = vunpack.c.l.b16 %v445
  %v491 = vunpack.c.l.b16 %v446
  %v492 = vunpack.c.l.b16 %v447
  %v493 = vunpack.c.l.b16 %v448
  %v494 = vunpack.c.l.b16 %v449
  %v495 = vunpack.c.l.b16 %v450
  %v496 = vunpack.c.l.b16 %v451
  %v497 = vunpack.c.l.b16 %v452
  %v498 = vunpack.c.l.b16 %v453
  %v499 = vunpack.c.l.b16 %v454
  %v500 = vunpack.c.l.b16 %v455
  %v501 = vunpack.c.l.b16 %v456
  %v502 = vunpack.c.l.b16 %v457
  %v503 = vpack.c.b16 %v485, %v484
  %v504 = vpack.c.b16 %v487, %v486
  %v505 = vpack.c.b16 %v489, %v488
  %v506 = vpack.c.b16 %v491, %v490
  %v507 = vpack.c.b16 %v493, %v492
  %v508 = vpack.c.b16 %v495, %v494
  %v509 = vpack.c.b16 %v497, %v496
  %v510 = vpack.c.b16 %v499, %v498
  %v511 = vpack.c.b16 %v501, %v500
  %v512 = vpack.c.b16 %v502, %v502
  %vm522 = vcmask 179200
  %v524 = vsel %vm522, %v438, 0
  %vm526 = vcmask 1042432
  %v528 = vsel %vm526, %v512, 0
  %530 = vmatprep.subr.bf16.mxu0 0
  %531 = vmatpush1.bf16.msra.mxu0 %v503
  %532 = vmatprep.subr.bf16.mxu0 0
  %533 = vmatpush1.bf16.msra.mxu0 %v504
  %534 = vmatprep.subr.bf16.mxu0 0
  %535 = vmatpush1.bf16.msra.mxu0 %v505
  %536 = vmatprep.subr.bf16.mxu0 0
  %537 = vmatpush1.bf16.msra.mxu0 %v506
  %538 = vmatprep.subr.bf16.mxu0 0
  %539 = vmatpush1.bf16.msra.mxu0 %v507
  %540 = vmatprep.subr.bf16.mxu0 0
  %541 = vmatpush1.bf16.msra.mxu0 %v508
  %542 = vmatprep.subr.bf16.mxu0 0
  %543 = vmatpush1.bf16.msra.mxu0 %v509
  %544 = vmatprep.subr.bf16.mxu0 0
  %545 = vmatpush1.bf16.msra.mxu0 %v510
  %546 = vmatprep.subr.bf16.mxu0 0
  %547 = vmatpush1.bf16.msra.mxu0 %v511
  %548 = vmatprep.subr.bf16.mxu0 0
  %549 = vmatpush1.bf16.msra.mxu0 %v528
  %550 = vmatprep.subr.bf16.mxu0 0
  %551 = vmatpush1.bf16.msra.mxu0 0
  %552 = vmatprep.subr.bf16.mxu0 0
  %553 = vmatpush1.bf16.msra.mxu0 0
  %554 = vmatprep.subr.bf16.mxu0 0
  %555 = vmatpush1.bf16.msra.mxu0 0
  %556 = vmatprep.subr.bf16.mxu0 0
  %557 = vmatpush1.bf16.msra.mxu0 0
  %558 = vmatprep.subr.bf16.mxu0 0
  %559 = vmatpush1.bf16.msra.mxu0 0
  %560 = vmatprep.subr.bf16.mxu0 0
  %561 = vmatpush1.bf16.msra.mxu0 0
  %562 = vmatprep.mubr.bf16.mxu0 %v524
  %563 = vmatmul.mubr.bf16.gmra.mrb[0].mxu0 %v437
  %v564 = vpop.f32.mrb[0].mxu0
  %v565 = vadd.f32 %v463, %v564
  %v566 = vpop.f32.mrb[0].mxu0
  %v567 = vpop.f32.mrb[0].mxu0
  %v568 = vadd.f32 %v463, %v567
  %v569 = vpop.f32.mrb[0].mxu0
  %570 = vdwg.mxu0
  %v571 = vmul.f32 %v565, 0.5
  %v572 = vmul.f32 %v568, 0.5
  %v573 = vtanh.pop %v571
  %v574 = vtanh.pop %v572
  %v575 = vmul.f32 %v573, 0.5
  %v576 = vmul.f32 %v574, 0.5
  %v577 = vadd.f32 %v575, 0.5
  %v578 = vadd.f32 %v576, 0.5
  %v579 = vpack.c.bf16 %v578, %v577
  %v580 = vld [vmem:[%s5] sm:$0xf]
  %v581 = vld [vmem:[%s5 + $0x4] sm:$0xf]
  %v582 = vld [vmem:[%s5 + $0x8] sm:$0xf]
  %v583 = vld [vmem:[%s5 + $0xc] sm:$0xf]
  %v584 = vld [vmem:[%s5 + $0x10] sm:$0xf]
  %v585 = vld [vmem:[%s5 + $0x14] sm:$0xf]
  %v586 = vld [vmem:[%s5 + $0x18] sm:$0x1]
  %v587 = vld [vmem:[%s6] sm:$0x1]
  %v589 = vlaneseq
  %v590 = vshrl.u32 %v589, 7
  %v591 = vsub.s32 0, %v590
  %v592 = vrot.slane %v587, %v591
  %v601 = vunpack.c.l.b16 %v580
  %v602 = vunpack.c.l.b16 %v581
  %v603 = vunpack.c.l.b16 %v582
  %v604 = vunpack.c.l.b16 %v583
  %v605 = vunpack.c.l.b16 %v584
  %v606 = vunpack.c.l.b16 %v585
  %v607 = vunpack.c.l.b16 %v586
  %v608 = vpack.c.b16 %v602, %v601
  %v609 = vpack.c.b16 %v604, %v603
  %v610 = vpack.c.b16 %v606, %v605
  %v611 = vpack.c.b16 %v607, %v607
  %vm615 = vcmask 408576
  %v617 = vsel %vm615, %v579, 0
  %vm619 = vcmask 1040384
  %v621 = vsel %vm619, %v611, 0
  %623 = vmatprep.subr.bf16.mxu0 0
  %624 = vmatpush1.bf16.msra.mxu0 %v608
  %625 = vmatprep.subr.bf16.mxu0 0
  %626 = vmatpush1.bf16.msra.mxu0 %v609
  %627 = vmatprep.subr.bf16.mxu0 0
  %628 = vmatpush1.bf16.msra.mxu0 %v610
  %629 = vmatprep.subr.bf16.mxu0 0
  %630 = vmatpush1.bf16.msra.mxu0 %v621
  %631 = vmatprep.subr.bf16.mxu0 0
  %632 = vmatpush1.bf16.msra.mxu0 0
  %633 = vmatprep.subr.bf16.mxu0 0
  %634 = vmatpush1.bf16.msra.mxu0 0
  %635 = vmatprep.subr.bf16.mxu0 0
  %636 = vmatpush1.bf16.msra.mxu0 0
  %637 = vmatprep.subr.bf16.mxu0 0
  %638 = vmatpush1.bf16.msra.mxu0 0
  %639 = vmatprep.subr.bf16.mxu0 0
  %640 = vmatpush1.bf16.msra.mxu0 0
  %641 = vmatprep.subr.bf16.mxu0 0
  %642 = vmatpush1.bf16.msra.mxu0 0
  %643 = vmatprep.subr.bf16.mxu0 0
  %644 = vmatpush1.bf16.msra.mxu0 0
  %645 = vmatprep.subr.bf16.mxu0 0
  %646 = vmatpush1.bf16.msra.mxu0 0
  %647 = vmatprep.subr.bf16.mxu0 0
  %648 = vmatpush1.bf16.msra.mxu0 0
  %649 = vmatprep.subr.bf16.mxu0 0
  %650 = vmatpush1.bf16.msra.mxu0 0
  %651 = vmatprep.subr.bf16.mxu0 0
  %652 = vmatpush1.bf16.msra.mxu0 0
  %653 = vmatprep.subr.bf16.mxu0 0
  %654 = vmatpush1.bf16.msra.mxu0 0
  %655 = vmatprep.mubr.bf16.mxu0 0
  %656 = vmatmul.mubr.bf16.gmra.mrb[0].mxu0 %v617
  %v657 = vpop.f32.mrb[0].mxu0
  %v658 = vadd.f32 %v592, %v657
  %v659 = vpop.f32.mrb[0].mxu0
  %v660 = vpop.f32.mrb[0].mxu0
  %v661 = vadd.f32 %v592, %v660
  %v662 = vpop.f32.mrb[0].mxu0
  %663 = vdwg.mxu0
  %v664 = vmul.f32 %v658, 0.5
  %v665 = vmul.f32 %v661, 0.5
  %v666 = vtanh.pop %v664
  %v667 = vtanh.pop %v665
  %v668 = vmul.f32 %v666, 0.5
  %v669 = vmul.f32 %v667, 0.5
  %v670 = vadd.f32 %v668, 0.5
  %v671 = vadd.f32 %v669, 0.5
  %v672 = vpack.c.bf16 %v671, %v670
  %v673 = vld [vmem:[%s7] sm:$0xf]
  %v674 = vld [vmem:[%s7 + $0x4] sm:$0xf]
  %v675 = vld [vmem:[%s8] sm:$0x1]
  %v677 = vlaneseq
  %v678 = vshrl.u32 %v677, 7
  %v679 = vsub.s32 0, %v678
  %v680 = vrot.slane %v675, %v679
  %v684 = vunpack.c.l.b16 %v673
  %v685 = vunpack.c.l.b16 %v674
  %v686 = vpack.c.b16 %v685, %v684
  %vm687 = vcmask 121856
  %v689 = vsel %vm687, %v672, 0
  %vm691 = vcmask 1047552
  %v692 = vsel %vm328, 4294967295, 65535
  %v693 = vsel %vm691, %v692, 0
  %v695 = vand.u32 %v686, %v693
  %697 = vmatprep.subr.bf16.mxu0 0
  %698 = vmatpush1.bf16.msra.mxu0 %v695
  %699 = vmatprep.subr.bf16.mxu0 0
  %700 = vmatpush1.bf16.msra.mxu0 0
  %701 = vmatprep.subr.bf16.mxu0 0
  %702 = vmatpush1.bf16.msra.mxu0 0
  %703 = vmatprep.subr.bf16.mxu0 0
  %704 = vmatpush1.bf16.msra.mxu0 0
  %705 = vmatprep.subr.bf16.mxu0 0
  %706 = vmatpush1.bf16.msra.mxu0 0
  %707 = vmatprep.subr.bf16.mxu0 0
  %708 = vmatpush1.bf16.msra.mxu0 0
  %709 = vmatprep.subr.bf16.mxu0 0
  %710 = vmatpush1.bf16.msra.mxu0 0
  %711 = vmatprep.subr.bf16.mxu0 0
  %712 = vmatpush1.bf16.msra.mxu0 0
  %713 = vmatprep.subr.bf16.mxu0 0
  %714 = vmatpush1.bf16.msra.mxu0 0
  %715 = vmatprep.subr.bf16.mxu0 0
  %716 = vmatpush1.bf16.msra.mxu0 0
  %717 = vmatprep.subr.bf16.mxu0 0
  %718 = vmatpush1.bf16.msra.mxu0 0
  %719 = vmatprep.subr.bf16.mxu0 0
  %720 = vmatpush1.bf16.msra.mxu0 0
  %721 = vmatprep.subr.bf16.mxu0 0
  %722 = vmatpush1.bf16.msra.mxu0 0
  %723 = vmatprep.subr.bf16.mxu0 0
  %724 = vmatpush1.bf16.msra.mxu0 0
  %725 = vmatprep.subr.bf16.mxu0 0
  %726 = vmatpush1.bf16.msra.mxu0 0
  %727 = vmatprep.subr.bf16.mxu0 0
  %728 = vmatpush1.bf16.msra.mxu0 0
  %729 = vmatprep.mubr.bf16.mxu0 0
  %730 = vmatmul.mubr.bf16.gmra.mrb[0].mxu0 %v689
  %v731 = vpop.f32.mrb[0].mxu0
  %v732 = vadd.f32 %v680, %v731
  %v733 = vpop.f32.mrb[0].mxu0
  %v734 = vpop.f32.mrb[0].mxu0
  %v735 = vadd.f32 %v680, %v734
  %v736 = vpop.f32.mrb[0].mxu0
  %737 = vdwg.mxu0
  %v738 = vmul.f32 %v732, 0.5
  %v739 = vmul.f32 %v735, 0.5
  %v740 = vtanh.pop %v738
  %v741 = vtanh.pop %v739
  %v742 = vmul.f32 %v740, 0.5
  %v743 = vmul.f32 %v741, 0.5
  %v744 = vadd.f32 %v742, 0.5
  %v745 = vadd.f32 %v743, 0.5
  %v746 = vpack.c.bf16 %v745, %v744
  %v747 = vld [vmem:[%s9] sm:$0x7]
  %v748 = vld [vmem:[#allocation2] sm:$0x1]
  %v750 = vlaneseq
  %v751 = vshrl.u32 %v750, 7
  %v752 = vsub.s32 0, %v751
  %v753 = vrot.slane %v748, %v752
  %vm755 = vcmask 39936
  %v757 = vsel %vm755, %v746, 0
  %vm759 = vcmask 1041408
  %v760 = vsel %vm759, 4294967295, 65535
  %v761 = vsel %vm526, %v760, 0
  %v763 = vand.u32 %v747, %v761
  %765 = vmatprep.subr.bf16.mxu0 0
  %766 = vmatpush1.bf16.msra.mxu0 %v763
  %767 = vmatprep.subr.bf16.mxu0 0
  %768 = vmatpush1.bf16.msra.mxu0 0
  %769 = vmatprep.subr.bf16.mxu0 0
  %770 = vmatpush1.bf16.msra.mxu0 0
  %771 = vmatprep.subr.bf16.mxu0 0
  %772 = vmatpush1.bf16.msra.mxu0 0
  %773 = vmatprep.subr.bf16.mxu0 0
  %774 = vmatpush1.bf16.msra.mxu0 0
  %775 = vmatprep.subr.bf16.mxu0 0
  %776 = vmatpush1.bf16.msra.mxu0 0
  %777 = vmatprep.subr.bf16.mxu0 0
  %778 = vmatpush1.bf16.msra.mxu0 0
  %779 = vmatprep.subr.bf16.mxu0 0
  %780 = vmatpush1.bf16.msra.mxu0 0
  %781 = vmatprep.subr.bf16.mxu0 0
  %782 = vmatpush1.bf16.msra.mxu0 0
  %783 = vmatprep.subr.bf16.mxu0 0
  %784 = vmatpush1.bf16.msra.mxu0 0
  %785 = vmatprep.subr.bf16.mxu0 0
  %786 = vmatpush1.bf16.msra.mxu0 0
  %787 = vmatprep.subr.bf16.mxu0 0
  %788 = vmatpush1.bf16.msra.mxu0 0
  %789 = vmatprep.subr.bf16.mxu0 0
  %790 = vmatpush1.bf16.msra.mxu0 0
  %791 = vmatprep.subr.bf16.mxu0 0
  %792 = vmatpush1.bf16.msra.mxu0 0
  %793 = vmatprep.subr.bf16.mxu0 0
  %794 = vmatpush1.bf16.msra.mxu0 0
  %795 = vmatprep.subr.bf16.mxu0 0
  %796 = vmatpush1.bf16.msra.mxu0 0
  %797 = vmatprep.mubr.bf16.mxu0 0
  %798 = vmatmul.mubr.bf16.gmra.mrb[0].mxu0 %v757
  %v799 = vpop.f32.mrb[0].mxu0
  %v800 = vadd.f32 %v753, %v799
  %v801 = vpop.f32.mrb[0].mxu0
  %v802 = vpop.f32.mrb[0].mxu0
  %v803 = vadd.f32 %v753, %v802
  %v804 = vpop.f32.mrb[0].mxu0
  %805 = vdwg.mxu0
  %vm806 = vcmask 7168
  %807 = vst.msk [vmem:[%s11] sm:$0xff] %vm806, %v800
  %808 = vst.msk [vmem:[%s11 + $0x8] sm:$0xff] %vm806, %v803
  // Predicated region
  $region46: #{dir_net_forward.1} parent=0 // pred_check
    _
  $region47: #{dir_net_forward.1} parent=0 // pred_check_branch
    %810 = sbr.rel (0) target = $region49
  $region48: #{dir_net_forward.1} parent=0 // pred_region
    _
  $region49: #{dir_net_forward.1} parent=0 // pred_fallthru
    _
  // Predicated region
  $region50: #{dir_net_forward.1} parent=0 // pred_check
    _
  $region51: #{dir_net_forward.1} parent=0 // pred_check_branch
    %812 = sbr.rel (0) target = $region53
  $region52: #{dir_net_forward.1} parent=0 // pred_region
    _
  $region53: #{dir_net_forward.1} parent=0 // pred_fallthru
    _

</llo_original>
